<compile_context>
chip_gen: v6e
topology: v6e:2x2x1
jax: 0.10.0
libtpu: 0.0.40
codegen_flags: <defaults>
</compile_context>

<pallas_src>
import jax
import jax.numpy as jnp
from jax.experimental import pallas as pl
from jax.experimental.pallas import tpu as pltpu


# --------------------------------------------------------------------------- #
# helpers
# --------------------------------------------------------------------------- #
def _round_up(x, m):
    return ((x + m - 1) // m) * m


def _pick_vmem_limit():
    """Per-generation VMEM limit: ~3/4 of physical, capped at 100 MiB.
    (v5e/v6e: ~96 MiB of 128 MiB; v7x: 48 MiB of 64 MiB)."""
    try:
        phys = pltpu.get_tpu_info().vmem_capacity_bytes
    except Exception:
        phys = 64 * 1024 * 1024
    return int(min(phys * 3 // 4, 100 * 1024 * 1024))


def _max_tile_rows(k, cout, budget_bytes):
    """Largest row tile whose double-buffered bf16 patches/y blocks, the
    double-buffered bf16 weight and the f32 accumulator fit the VMEM budget."""
    fixed = 2 * (2 * k * cout)                               # 2x bf16 weight
    per_row = 2 * (2 * k) + 2 * (2 * cout) + 4 * cout + 2 * cout
    rows = (budget_bytes - fixed) // max(per_row, 1)
    return int(max(128, min(rows, 4096)))


def _pick_tile_rows(hwo, max_rows):
    """(rows per block, blocks per image).  Single block per image when it
    fits (rounded to 8); otherwise multiple-of-128 blocks (legal last dim for
    the channel-major y / output), preferring an exact divisor (no pad rows)."""
    if hwo <= max_rows:
        return _round_up(hwo, 8), 1
    cap = max(128, (max_rows // 128) * 128)
    for t in range(cap, 127, -128):          # largest 128-multiple divisor
        if hwo % t == 0:
            return t, hwo // t
    n_blk = -(-hwo // cap)                   # balanced blocks, <=128*n_blk pad
    return _round_up(-(-hwo // n_blk), 128), n_blk


# --------------------------------------------------------------------------- #
# kernels
# --------------------------------------------------------------------------- #
def conv_stats_kernel(p_ref, w_ref, y_ref, stats_ref):
    """One (image, row-block): bias-free conv matmul + partial channel stats.

    p_ref:(1,tile_hw,K) bf16   w_ref:(K,Cout) bf16
    y_ref:(1,Cout,tile_hw) bf16 (channel-major)   stats_ref:(1,1,2,Cout) f32
    """
    z = jnp.dot(p_ref[0], w_ref[...], preferred_element_type=jnp.float32)
    # partial stats from the f32 MXU output (unaffected by bf16 storage of y)
    stats_ref[0, 0, 0:1, :] = jnp.sum(z, axis=0, keepdims=True)
    stats_ref[0, 0, 1:2, :] = jnp.sum(z * z, axis=0, keepdims=True)
    # channel-major store: the layout change rides along with the MXU kernel
    y_ref[0] = jnp.transpose(z).astype(y_ref.dtype)


def bn_nchw_kernel(y_ref, scale_ref, shift_ref, o_ref):
    """Pure broadcast FMA: y is already channel-major (Cout, tile_hw)."""
    o_ref[0] = y_ref[0].astype(jnp.float32) * scale_ref[...] + shift_ref[...]


# --------------------------------------------------------------------------- #
# wrapper
# --------------------------------------------------------------------------- #
def down_sampling_stage234(x, conv_w, conv_b, bn_gamma, bn_beta,
                           eps=1e-5, compute_dtype=jnp.bfloat16):
    """x: (N, Cin, H, W) f32 -> (N, Cout, ceil(H/2), ceil(W/2)) f32."""
    # NOTE: conv_b is intentionally dropped — it cancels exactly under
    # training-mode (batch-stats) BatchNorm.  Do NOT reuse this path for
    # eval-mode / running-stats BN.
    del conv_b

    N, Cin, H, W = x.shape
    Cout = conv_w.shape[0]
    Ho = (H - 1) // 2 + 1
    Wo = (W - 1) // 2 + 1
    HWo = Ho * Wo
    K = Cin * 9

    vmem_limit = _pick_vmem_limit()
    max_rows = _max_tile_rows(K, Cout, vmem_limit // 2)
    tile_hw, n_blk = _pick_tile_rows(HWo, max_rows)
    hwo_p = tile_hw * n_blk

    # ---- glue: im2col in bf16, K ordered (kh, kw, ci), per-image rows ----
    # (see TODO(synk) in the header: fold this gather into kernel 1 eventually)
    x_nhwc = jnp.transpose(x, (0, 2, 3, 1)).astype(compute_dtype)   # (N,H,W,Cin)
    x_pad = jnp.pad(x_nhwc, ((0, 0), (1, 1), (1, 1), (0, 0)))
    taps = [x_pad[:, kh:kh + 2 * Ho:2, kw:kw + 2 * Wo:2, :]
            for kh in range(3) for kw in range(3)]
    patches = jnp.stack(taps, axis=3).reshape(N, HWo, K)            # (N,HWo,9*Cin)
    if hwo_p != HWo:
        # zero rows: contribute exactly 0 to the bias-free stats
        patches = jnp.pad(patches, ((0, 0), (0, hwo_p - HWo), (0, 0)))

    # weight (Cout, Cin, 3, 3) -> (K, Cout), K ordered (kh, kw, ci)
    w2d = jnp.transpose(conv_w, (2, 3, 1, 0)).reshape(K, Cout).astype(compute_dtype)

    # ---- kernel 1: conv matmul + partial batch stats, channel-major y ----
    y, part_stats = pl.pallas_call(
        conv_stats_kernel,
        out_shape=(jax.ShapeDtypeStruct((N, Cout, hwo_p), compute_dtype),
                   jax.ShapeDtypeStruct((N, n_blk, 2, Cout), jnp.float32)),
        grid_spec=pltpu.PrefetchScalarGridSpec(
            num_scalar_prefetch=0,
            grid=(N, n_blk),
            in_specs=[pl.BlockSpec((1, tile_hw, K), lambda n, j: (n, j, 0)),
                      pl.BlockSpec((K, Cout), lambda n, j: (0, 0))],
            out_specs=(pl.BlockSpec((1, Cout, tile_hw), lambda n, j: (n, 0, j)),
                       pl.BlockSpec((1, 1, 2, Cout), lambda n, j: (n, j, 0, 0)))),
        compiler_params=pltpu.CompilerParams(
            dimension_semantics=("parallel", "parallel"),
            vmem_limit_bytes=vmem_limit),
    )(patches, w2d)

    # ---- tiny wrapper math: reduce stats, fold BN into per-channel FMA ----
    count = N * HWo                                   # true count (pad rows are 0)
    s = jnp.sum(part_stats, axis=(0, 1))              # (2, Cout) f32
    mean = s[0] / count
    # TODO(synk): single-pass E[x^2]-E[x]^2 can lose precision if a channel has
    # |mean| >> std; fine for bias-free conv activations, else go two-pass.
    var = jnp.maximum(s[1] / count - mean * mean, 0.0)   # biased, like PyTorch
    inv = jax.lax.rsqrt(var + eps)
    scale_vec = bn_gamma.astype(jnp.float32) * inv
    shift_vec = bn_beta.astype(jnp.float32) - mean * scale_vec
    scale = scale_vec.reshape(Cout, 1)
    shift = shift_vec.reshape(Cout, 1)

    # ---- kernel 2: BN FMA on channel-major y (no transpose, no fallback) ----
    out = pl.pallas_call(
        bn_nchw_kernel,
        out_shape=jax.ShapeDtypeStruct((N, Cout, hwo_p), jnp.float32),
        grid_spec=pltpu.PrefetchScalarGridSpec(
            num_scalar_prefetch=0,
            grid=(N, n_blk),
            in_specs=[pl.BlockSpec((1, Cout, tile_hw), lambda n, j: (n, 0, j)),
                      pl.BlockSpec((Cout, 1), lambda n, j: (0, 0)),
                      pl.BlockSpec((Cout, 1), lambda n, j: (0, 0))],
            out_specs=pl.BlockSpec((1, Cout, tile_hw), lambda n, j: (n, 0, j))),
        compiler_params=pltpu.CompilerParams(
            dimension_semantics=("parallel", "parallel"),
            vmem_limit_bytes=vmem_limit),
    )(y, scale, shift)

    if hwo_p != HWo:
        out = out[:, :, :HWo]
    return out.reshape(N, Cout, Ho, Wo)


# --------------------------------------------------------------------------- #
# pure-JAX reference (PyTorch module semantics)
# --------------------------------------------------------------------------- #
def _reference(x, conv_w, conv_b, bn_gamma, bn_beta, eps=1e-5):
    y = jax.lax.conv_general_dilated(
        x, conv_w, window_strides=(2, 2), padding=((1, 1), (1, 1)),
        dimension_numbers=("NCHW", "OIHW", "NCHW"),
        precision=jax.lax.Precision.HIGHEST)
    y = y + conv_b[None, :, None, None]
    mean = jnp.mean(y, axis=(0, 2, 3), keepdims=True)
    var = jnp.mean((y - mean) ** 2, axis=(0, 2, 3), keepdims=True)  # biased
    y = (y - mean) * jax.lax.rsqrt(var + eps)
    return y * bn_gamma[None, :, None, None] + bn_beta[None, :, None, None]


if __name__ == "__main__":
    N, Cin, H, W = 2, 4, 16, 16
    Cout = 8

    key = jax.random.PRNGKey(0)
    kx, kw, kb, kg, kbe = jax.random.split(key, 5)
    x = jax.random.normal(kx, (N, Cin, H, W), dtype=jnp.float32)
    conv_w = 0.1 * jax.random.normal(kw, (Cout, Cin, 3, 3), dtype=jnp.float32)
    conv_b = 0.1 * jax.random.normal(kb, (Cout,), dtype=jnp.float32)
    bn_gamma = 1.0 + 0.1 * jax.random.normal(kg, (Cout,), dtype=jnp.float32)
    bn_beta = 0.1 * jax.random.normal(kbe, (Cout,), dtype=jnp.float32)

    out = down_sampling_stage234(x, conv_w, conv_b, bn_gamma, bn_beta)
    out = jax.block_until_ready(out)
    assert out.shape == (N, Cout, H // 2, W // 2), out.shape

    # Tight check against a reference with the same (intentional) bf16
    # quantization of the matmul operands, all other math in f32.
    xq = x.astype(jnp.bfloat16).astype(jnp.float32)
    wq = conv_w.astype(jnp.bfloat16).astype(jnp.float32)
    ref_q = _reference(xq, wq, conv_b, bn_gamma, bn_beta)
    err_q = float(jnp.max(jnp.abs(out - ref_q)))
    assert jnp.allclose(out, ref_q, atol=2e-2, rtol=2e-2), err_q

    # Loose sanity check against the true f32 module (difference is the
    # intentional bf16 operand / bf16-intermediate quantization).
    ref = _reference(x, conv_w, conv_b, bn_gamma, bn_beta)
    err = float(jnp.max(jnp.abs(out - ref)))
    assert err < 1e-1, err

    print("KERNEL_OK")
</pallas_src>

<mosaic_0001>
module attributes {stable_mosaic.version = 11 : i64} {
  func.func @conv_stats_kernel(%arg0: i32, %arg1: i32, %arg2: memref<1x64x36xbf16, #tpu.memory_space<vmem>>, %arg3: memref<36x8xbf16, #tpu.memory_space<vmem>>, %arg4: memref<1x8x64xbf16, #tpu.memory_space<vmem>>, %arg5: memref<1x1x2x8xf32, #tpu.memory_space<vmem>>) attributes {dimension_semantics = [#tpu.dimension_semantics<parallel>, #tpu.dimension_semantics<parallel>], iteration_bounds = array<i64: 2, 1>, scalar_prefetch = 0 : i64, scratch_operands = 0 : i64, tpu.core_type = #tpu.core_type<tc>, window_params = [{transform_indices = @transform_0, window_bounds = array<i64: 1, 64, 36>}, {pipeline_mode = #tpu.pipeline_mode<synchronous>, transform_indices = @transform_1, window_bounds = array<i64: 36, 8>}, {transform_indices = @transform_2, window_bounds = array<i64: 1, 8, 64>}, {transform_indices = @transform_3, window_bounds = array<i64: 1, 1, 2, 8>}]} {
    %c0 = arith.constant 0 : index
    %c0_0 = arith.constant 0 : index
    %c0_1 = arith.constant 0 : index
    %0 = vector.load %arg2[%c0, %c0_0, %c0_1] : memref<1x64x36xbf16, #tpu.memory_space<vmem>>, vector<1x64x36xbf16>
    %1 = vector.shape_cast %0 : vector<1x64x36xbf16> to vector<64x36xbf16>
    %c0_2 = arith.constant 0 : index
    %c0_3 = arith.constant 0 : index
    %2 = vector.load %arg3[%c0_2, %c0_3] : memref<36x8xbf16, #tpu.memory_space<vmem>>, vector<36x8xbf16>
    %cst = arith.constant dense<0.000000e+00> : vector<64x8xf32>
    %3 = tpu.matmul %1, %2, %cst {dimension_numbers = #tpu.dot_dimension_numbers<[1], [0], [0], [1], [0, 0, 1, 1], [], []>} : vector<64x36xbf16>, vector<36x8xbf16>, vector<64x8xf32> -> vector<64x8xf32>
    %cst_4 = arith.constant dense<0.000000e+00> : vector<8xf32>
    %4 = vector.multi_reduction <add>, %3, %cst_4 [0] : vector<64x8xf32> to vector<8xf32>
    %5 = vector.shape_cast %4 : vector<8xf32> to vector<1x8xf32>
    %c0_5 = arith.constant 0 : index
    %c0_6 = arith.constant 0 : index
    %c0_7 = arith.constant 0 : index
    %c0_8 = arith.constant 0 : index
    %6 = vector.load %arg5[%c0_5, %c0_6, %c0_7, %c0_8] : memref<1x1x2x8xf32, #tpu.memory_space<vmem>>, vector<1x1x1x8xf32>
    %7 = vector.shape_cast %6 : vector<1x1x1x8xf32> to vector<1x8xf32>
    %8 = vector.shape_cast %5 : vector<1x8xf32> to vector<1x1x1x8xf32>
    tpu.vector_store %arg5[%c0_5, %c0_6, %c0_7, %c0_8], %8 {strides = array<i32>} : memref<1x1x2x8xf32, #tpu.memory_space<vmem>>, vector<1x1x1x8xf32>,
    %9 = arith.mulf %3, %3 : vector<64x8xf32>
    %cst_9 = arith.constant dense<0.000000e+00> : vector<8xf32>
    %10 = vector.multi_reduction <add>, %9, %cst_9 [0] : vector<64x8xf32> to vector<8xf32>
    %11 = vector.shape_cast %10 : vector<8xf32> to vector<1x8xf32>
    %c0_10 = arith.constant 0 : index
    %c0_11 = arith.constant 0 : index
    %c1 = arith.constant 1 : index
    %c0_12 = arith.constant 0 : index
    %12 = vector.load %arg5[%c0_10, %c0_11, %c1, %c0_12] : memref<1x1x2x8xf32, #tpu.memory_space<vmem>>, vector<1x1x1x8xf32>
    %13 = vector.shape_cast %12 : vector<1x1x1x8xf32> to vector<1x8xf32>
    %14 = vector.shape_cast %11 : vector<1x8xf32> to vector<1x1x1x8xf32>
    tpu.vector_store %arg5[%c0_10, %c0_11, %c1, %c0_12], %14 {strides = array<i32>} : memref<1x1x2x8xf32, #tpu.memory_space<vmem>>, vector<1x1x1x8xf32>,
    %15 = tpu.transpose %3, [1, 0] : vector<64x8xf32> -> vector<8x64xf32>
    %16 = arith.truncf %15 : vector<8x64xf32> to vector<8x64xbf16>
    %c0_13 = arith.constant 0 : index
    %c0_14 = arith.constant 0 : index
    %c0_15 = arith.constant 0 : index
    %17 = vector.load %arg4[%c0_13, %c0_14, %c0_15] : memref<1x8x64xbf16, #tpu.memory_space<vmem>>, vector<1x8x64xbf16>
    %18 = vector.shape_cast %17 : vector<1x8x64xbf16> to vector<8x64xbf16>
    %19 = vector.shape_cast %16 : vector<8x64xbf16> to vector<1x8x64xbf16>
    tpu.vector_store %arg4[%c0_13, %c0_14, %c0_15], %19 {strides = array<i32>} : memref<1x8x64xbf16, #tpu.memory_space<vmem>>, vector<1x8x64xbf16>,
    return
  }
  func.func @transform_0(%arg0: i32, %arg1: i32) -> (i32, i32, i32) {
    %c0_i32 = arith.constant 0 : i32
    %c0_i32_0 = arith.constant 0 : i32
    return %arg0, %arg1, %c0_i32 : i32, i32, i32
  }
  func.func @transform_1(%arg0: i32, %arg1: i32) -> (i32, i32) {
    %c0_i32 = arith.constant 0 : i32
    %c0_i32_0 = arith.constant 0 : i32
    %c0_i32_1 = arith.constant 0 : i32
    return %c0_i32, %c0_i32_0 : i32, i32
  }
  func.func @transform_2(%arg0: i32, %arg1: i32) -> (i32, i32, i32) {
    %c0_i32 = arith.constant 0 : i32
    %c0_i32_0 = arith.constant 0 : i32
    return %arg0, %c0_i32, %arg1 : i32, i32, i32
  }
  func.func @transform_3(%arg0: i32, %arg1: i32) -> (i32, i32, i32, i32) {
    %c0_i32 = arith.constant 0 : i32
    %c0_i32_0 = arith.constant 0 : i32
    %c0_i32_1 = arith.constant 0 : i32
    return %arg0, %arg1, %c0_i32, %c0_i32_0 : i32, i32, i32, i32
  }
}

</mosaic_0001>

<llo_original>
// kernel: tpu_custom_call.1
$region0: #{tpu_custom_call.1}
  #allocation0 [shape = 'u32[]', space=smem, size = 0x4, offset = 0x4, fixed_abs, tag = 'smem constant byte address 0x4 - core index']
  #allocation1 [shape = 'u32[144,128]{1,0:T(1,128)}', space=vmem, size = 0x12000, scoped, tag = 'internal scratch']
  %s0 = inlined_call_operand.vmem [shape: bf16[2,64,36], index: 0, kind: input, shape index: {}]
  %s1 = inlined_call_operand.vmem [shape: bf16[36,8], index: 1, kind: input, shape index: {}]
  %s2 = inlined_call_operand.hbm [shape: bf16[2,8,64], index: 2, kind: output, shape index: {0}]
  %s3 = inlined_call_operand.hbm [shape: f32[2,1,2,8], index: 3, kind: output, shape index: {1}]
  %4 = xla_tuple %s2, %s3
  %s5 = sld [smem:[#allocation0]]
  $region49: #{tpu_custom_call.1} parent=0
    _
  %s7 = ssub.s32 1, %s5
  %s8 = scalar_select 0, %s7, %s5
  $region1: #{tpu_custom_call.1} parent=0
    #allocation2 [shape = 'u8[4096]{0}', space=vmem, size = 0x1000, scoped, tag = 'output window, operand 0']
    #allocation3 [shape = 's32[2]{0}', space=sflag, size = 0x8, scoped, tag = 'scoped memory for tpu_custom_call.1']
    #allocation4 [shape = 'u8[2048]{0}', space=vmem, size = 0x800, scoped, tag = 'output window, operand 1']
    #allocation5 [shape = 's32[2]{0}', space=sflag, size = 0x8, scoped, tag = 'scoped memory for tpu_custom_call.1']
    %9 = vsyncpa [#allocation3], 0
    %s10 = scalar_lea.sflag [#allocation3], 1
    %11 = vsyncpa %s10, 0
    %12 = vsyncpa [#allocation5], 0
    %s13 = scalar_lea.sflag [#allocation5], 1
    %14 = vsyncpa %s13, 0
    loop: start=0, step=1, limit=4
    $region2: #{tpu_custom_call.1} parent=1 // loop_pre_header
      _
    $region3: #{tpu_custom_call.1} parent=1 // loop_header
      %s16 = sphi 0, %s20
      %p17 = scmp.ge.s32.totalorder %s16, 4
      %s23 = sphi 0, %s35
      %s24 = sphi 0, %s31
      %s25 = sphi 0, %s23
      %s26 = sphi 0, %s24
      %s27 = sphi 0, %s25
      %s28 = sphi 0, %s26
      %s40 = sphi 0, %s42
      %s43 = sphi 0, %s40
      %s44 = sphi 0, %s43
      %s60 = sphi 0, %s44
      %s64 = sphi 0, %s64
      %s66 = sphi 0, %s64
      %s67 = sphi 0, %s66
      %s81 = sphi 0, %s67
      %s89 = sphi 0, %s91
      %s92 = sphi 0, %s89
      %s93 = sphi 0, %s92
      %s109 = sphi 0, %s93
      %s117 = sphi 0, %s119
      %s120 = sphi 0, %s117
      %s121 = sphi 0, %s120
      %s137 = sphi 0, %s121
    $region4: #{tpu_custom_call.1} parent=1 // loop_header_branch
      %19 = sbr.rel (%p17) target = $region8
    $region5: #{tpu_custom_call.1} parent=1 // loop_body
      %s21 = ssub.s32 %s16, 1
      %s22 = ssub.s32 %s16, 2
      %s29 = sadd.s32 1, %s24
      %p30 = scmp.ge.s32.totalorder %s29, 1
      %s31 = scalar_select %p30, 0, %s29
      %s32 = sadd.s32 1, %s23
      %s33 = scalar_select %p30, %s32, %s23
      %p34 = scmp.ge.s32.totalorder %s33, 2
      %s35 = scalar_select %p34, 0, %s33
      %s36 = ssub.s32 %s23, %s35
      %s37 = ssub.s32 %s24, %s31
      %s38 = sor.u32 %s36, %s37
      %p39 = scmp.eq.s32.totalorder %s38, 0
      %s41 = sadd.s32 %s40, 1
      %s42 = scalar_select %p39, %s40, %s41
      %p45 = pneg %p39
      %p46 = scmp.eq.s32.totalorder %s16, 1
      %p47 = por %p45, %p46
      %p48 = scmp.ne.s32.totalorder %s40, %s43
      %p49 = scmp.eq.s32.totalorder %s16, 0
      %p50 = por %p48, %p49
      %p51 = scmp.ne.s32.totalorder %s40, %s43
      %p52 = scmp.eq.s32.totalorder %s21, 1
      %p53 = por %p51, %p52
      %p54 = scmp.ne.s32.totalorder %s43, %s44
      %p55 = scmp.eq.s32.totalorder %s21, 0
      %p56 = por %p54, %p55
      %p57 = scmp.ne.s32.totalorder %s43, %s44
      %p58 = scmp.eq.s32.totalorder %s22, 1
      %p59 = por %p57, %p58
      %p61 = scmp.ne.s32.totalorder %s44, %s60
      %p62 = scmp.eq.s32.totalorder %s22, 0
      %p63 = por %p61, %p62
      %s65 = sadd.s32 %s64, 1
      %p68 = scmp.eq.s32.totalorder %s16, 1
      %p69 = scmp.ne.s32.totalorder %s64, %s66
      %p70 = scmp.eq.s32.totalorder %s16, 0
      %p71 = por %p69, %p70
      %p72 = scmp.ne.s32.totalorder %s64, %s66
      %p73 = scmp.eq.s32.totalorder %s21, 1
      %p74 = por %p72, %p73
      %p75 = scmp.ne.s32.totalorder %s66, %s67
      %p76 = scmp.eq.s32.totalorder %s21, 0
      %p77 = por %p75, %p76
      %p78 = scmp.ne.s32.totalorder %s66, %s67
      %p79 = scmp.eq.s32.totalorder %s22, 1
      %p80 = por %p78, %p79
      %p82 = scmp.ne.s32.totalorder %s67, %s81
      %p83 = scmp.eq.s32.totalorder %s22, 0
      %p84 = por %p82, %p83
      %s85 = ssub.s32 %s23, %s35
      %s86 = ssub.s32 %s24, %s31
      %s87 = sor.u32 %s85, %s86
      %p88 = scmp.eq.s32.totalorder %s87, 0
      %s90 = sadd.s32 %s89, 1
      %s91 = scalar_select %p88, %s89, %s90
      %p94 = pneg %p88
      %p95 = scmp.eq.s32.totalorder %s16, 1
      %p96 = por %p94, %p95
      %p97 = scmp.ne.s32.totalorder %s89, %s92
      %p98 = scmp.eq.s32.totalorder %s16, 0
      %p99 = por %p97, %p98
      %p100 = scmp.ne.s32.totalorder %s89, %s92
      %p101 = scmp.eq.s32.totalorder %s21, 1
      %p102 = por %p100, %p101
      %p103 = scmp.ne.s32.totalorder %s92, %s93
      %p104 = scmp.eq.s32.totalorder %s21, 0
      %p105 = por %p103, %p104
      %p106 = scmp.ne.s32.totalorder %s92, %s93
      %p107 = scmp.eq.s32.totalorder %s22, 1
      %p108 = por %p106, %p107
      %p110 = scmp.ne.s32.totalorder %s93, %s109
      %p111 = scmp.eq.s32.totalorder %s22, 0
      %p112 = por %p110, %p111
      %s113 = ssub.s32 %s23, %s35
      %s114 = ssub.s32 %s24, %s31
      %s115 = sor.u32 %s113, %s114
      %p116 = scmp.eq.s32.totalorder %s115, 0
      %s118 = sadd.s32 %s117, 1
      %s119 = scalar_select %p116, %s117, %s118
      %p122 = pneg %p116
      %p123 = scmp.eq.s32.totalorder %s16, 1
      %p124 = por %p122, %p123
      %p125 = scmp.ne.s32.totalorder %s117, %s120
      %p126 = scmp.eq.s32.totalorder %s16, 0
      %p127 = por %p125, %p126
      %p128 = scmp.ne.s32.totalorder %s117, %s120
      %p129 = scmp.eq.s32.totalorder %s21, 1
      %p130 = por %p128, %p129
      %p131 = scmp.ne.s32.totalorder %s120, %s121
      %p132 = scmp.eq.s32.totalorder %s21, 0
      %p133 = por %p131, %p132
      %p134 = scmp.ne.s32.totalorder %s120, %s121
      %p135 = scmp.eq.s32.totalorder %s22, 1
      %p136 = por %p134, %p135
      %p138 = scmp.ne.s32.totalorder %s121, %s137
      %p139 = scmp.eq.s32.totalorder %s22, 0
      %p140 = por %p138, %p139
      %p141 = scmp.le.s32.totalorder 1, %s16
      %p142 = scmp.lt.s32.totalorder %s16, 3
      %p143 = pnand %p141, %p142
      %p144 = pneg %p143
      // Predicated region
      $region9: #{tpu_custom_call.1} parent=5 // pred_check
        _
      $region10: #{tpu_custom_call.1} parent=5 // pred_check_branch
        %146 = sbr.rel (%p143) target = $region12
      $region11: #{tpu_custom_call.1} parent=5 // pred_region
        %s147 = ssub.s32 %s16, 1
        // Predicated region
        $region13: #{tpu_custom_call.1} parent=11 // pred_check
          %p148 = pneg %p77
        $region14: #{tpu_custom_call.1} parent=11 // pred_check_branch
          %150 = sbr.rel (%p148) target = $region16
        $region15: #{tpu_custom_call.1} parent=11 // pred_region
          _
        $region16: #{tpu_custom_call.1} parent=11 // pred_fallthru
          _
      $region12: #{tpu_custom_call.1} parent=5 // pred_fallthru
        _
      %p151 = scmp.lt.s32.totalorder %s16, 2
      // Predicated region
      $region17: #{tpu_custom_call.1} parent=5 // pred_check
        %p152 = pneg %p151
      $region18: #{tpu_custom_call.1} parent=5 // pred_check_branch
        %154 = sbr.rel (%p152) target = $region20
      $region19: #{tpu_custom_call.1} parent=5 // pred_region
        // Predicated region
        $region21: #{tpu_custom_call.1} parent=19 // pred_check
          %p155 = pneg %p50
        $region22: #{tpu_custom_call.1} parent=19 // pred_check_branch
          %157 = sbr.rel (%p155) target = $region24
        $region23: #{tpu_custom_call.1} parent=19 // pred_region
          %s158 = smul.u32 8, %s24
          %p159 = scmp.lt.s32.totalorder %s23, 1
          %s160 = scalar_select %p159, %s23, 1
          %p161 = scmp.lt.s32.totalorder %s158, 7
          %s162 = scalar_select %p161, %s158, 7
          %s163 = smul.addr %s160, 8
          %s164 = sadd.s32 %s162, %s163
          %s165 = smul.addr %s164, 4
          %s166 = scalar_lea.vmem %s0, %s165
          %s167 = smul.u32 8, %s24
        $region24: #{tpu_custom_call.1} parent=19 // pred_fallthru
          _
      $region20: #{tpu_custom_call.1} parent=5 // pred_fallthru
        _
      %p168 = scmp.le.s32.totalorder 1, %s16
      %p169 = scmp.lt.s32.totalorder %s16, 3
      %p170 = pnand %p168, %p169
      %p171 = pneg %p170
      // Predicated region
      $region25: #{tpu_custom_call.1} parent=5 // pred_check
        _
      $region26: #{tpu_custom_call.1} parent=5 // pred_check_branch
        %173 = sbr.rel (%p170) target = $region28
      $region27: #{tpu_custom_call.1} parent=5 // pred_region
        %s174 = ssub.s32 %s16, 1
        %s175 = smul.u32 8, %s26
        %p176 = scmp.lt.s32.totalorder %s25, 1
        %s177 = scalar_select %p176, %s25, 1
        %p178 = scmp.lt.s32.totalorder %s175, 7
        %s179 = scalar_select %p178, %s175, 7
        %s180 = smul.addr %s177, 8
        %s181 = sadd.s32 %s179, %s180
        %s182 = smul.addr %s181, 4
        %s183 = scalar_lea.vmem %s0, %s182
        %p184 = pneg %p56
        %p185 = pneg %p53
        %p186 = pneg %p77
        %p187 = pneg %p74
        %p188 = pneg %p105
        %p189 = pneg %p102
        %s190 = sand.u32 %s92, 1
        %s191 = scalar_lea.sflag [#allocation3], %s190
        %s192 = sand.u32 %s92, 1
        %s193 = smul.addr %s192, 4
        %s194 = scalar_lea.vmem [#allocation2], %s193
        %p195 = pneg %p133
        %p196 = pneg %p130
        %s197 = sand.u32 %s120, 1
        %s198 = scalar_lea.sflag [#allocation5], %s197
        %s199 = sand.u32 %s120, 1
        %s200 = smul.addr %s199, 2
        %s201 = scalar_lea.vmem [#allocation4], %s200
        %s202 = smul.u32 8, %s26
        %p203 = scmp.lt.s32.totalorder %s25, 1
        %s204 = scalar_select %p203, %s25, 1
        %p205 = scmp.lt.s32.totalorder %s202, 7
        %s206 = scalar_select %p205, %s202, 7
        %s207 = smul.addr %s204, 8
        %s208 = sadd.s32 %s206, %s207
        %s209 = smul.addr %s208, 4
        %s210 = scalar_lea.vmem %s0, %s209
        %s211 = smul.u32 8, %s26
        %v213 = vld [vmem:[%s210] sm:$0xf]
        %v214 = vld [vmem:[%s210 + $0x4] sm:$0xf]
        %v215 = vld [vmem:[%s210 + $0x8] sm:$0xf]
        %v216 = vld [vmem:[%s210 + $0xc] sm:$0xf]
        %v217 = vld [vmem:[%s210 + $0x10] sm:$0xf]
        %v218 = vld [vmem:[%s210 + $0x14] sm:$0xf]
        %v219 = vld [vmem:[%s210 + $0x18] sm:$0xf]
        %v220 = vld [vmem:[%s210 + $0x1c] sm:$0xf]
        %v221 = vld [vmem:[%s1] sm:$0xf]
        %v222 = vld [vmem:[%s1 + $0x4] sm:$0xf]
        %v223 = vld [vmem:[%s1 + $0x8] sm:$0xf]
        %v224 = vld [vmem:[%s1 + $0xc] sm:$0xf]
        %v225 = vld [vmem:[%s1 + $0x10] sm:$0x3]
        %v234 = vunpack.c.l.b16 %v213
        %v235 = vunpack.c.l.b16 %v214
        %v236 = vunpack.c.l.b16 %v215
        %v237 = vunpack.c.l.b16 %v216
        %v238 = vunpack.c.l.b16 %v217
        %v239 = vunpack.c.l.b16 %v218
        %v240 = vunpack.c.l.b16 %v219
        %v241 = vunpack.c.l.b16 %v220
        %v242 = vpack.c.b16 %v235, %v234
        %v243 = vpack.c.b16 %v237, %v236
        %v244 = vpack.c.b16 %v239, %v238
        %v245 = vpack.c.b16 %v241, %v240
        %v251 = vunpack.c.l.b16 %v221
        %v252 = vunpack.c.l.b16 %v222
        %v253 = vunpack.c.l.b16 %v223
        %v254 = vunpack.c.l.b16 %v224
        %v255 = vunpack.c.l.b16 %v225
        %v256 = vpack.c.b16 %v252, %v251
        %v257 = vpack.c.b16 %v254, %v253
        %v258 = vpack.c.b16 %v255, %v255
        %vm261 = vcmask 293888
        %v263 = vsel %vm261, %v242, 0
        %v266 = vsel %vm261, %v243, 0
        %v269 = vsel %vm261, %v244, 0
        %v272 = vsel %vm261, %v245, 0
        %vm274 = vcmask 1041408
        %v276 = vsel %vm274, %v258, 0
        %278 = vmatprep.subr.bf16.mxu0 0
        %279 = vmatpush1.bf16.msra.mxu0 0
        %280 = vmatprep.subr.bf16.mxu0 0
        %281 = vmatpush1.bf16.msra.mxu0 0
        %282 = vmatprep.subr.bf16.mxu0 0
        %283 = vmatpush1.bf16.msra.mxu0 0
        %284 = vmatprep.subr.bf16.mxu0 0
        %285 = vmatpush1.bf16.msra.mxu0 0
        %286 = vmatprep.subr.bf16.mxu0 0
        %287 = vmatpush1.bf16.msra.mxu0 0
        %288 = vmatprep.subr.bf16.mxu0 0
        %289 = vmatpush1.bf16.msra.mxu0 %v276
        %290 = vmatprep.subr.bf16.mxu0 0
        %291 = vmatpush1.bf16.msra.mxu0 %v257
        %292 = vmatprep.subr.bf16.mxu0 0
        %293 = vmatpush1.bf16.msra.mxu0 %v256
        %294 = vmatprep.subr.bf16.mxu0 0
        %295 = vmatpush2.bf16.msra.mxu0 0
        %296 = vmatprep.subr.bf16.mxu0 0
        %297 = vmatpush2.bf16.msra.mxu0 0
        %298 = vmatprep.subr.bf16.mxu0 0
        %299 = vmatpush2.bf16.msra.mxu0 0
        %300 = vmatprep.subr.bf16.mxu0 0
        %301 = vmatpush2.bf16.msra.mxu0 0
        %302 = vmatprep.subr.bf16.mxu0 0
        %303 = vmatpush2.bf16.msra.mxu0 0
        %304 = vmatprep.subr.bf16.mxu0 0
        %305 = vmatpush2.bf16.msra.mxu0 0
        %306 = vmatprep.subr.bf16.mxu0 0
        %307 = vmatpush2.bf16.msra.mxu0 0
        %308 = vmatprep.subr.bf16.mxu0 0
        %309 = vmatpush2.bf16.msra.mxu0 0
        %310 = vmatprep.mubr.bf16.mxu0 0
        %311 = vmatmul.mubr.bf16.gmra.mxu0 %v263
        %v312 = vpop.f32.mrf.mxu0
        %v313 = vadd.f32 0.0, %v312
        %v314 = vpop.f32.mrf.mxu0
        %v315 = vpop.f32.mrf.mxu0
        %v316 = vadd.f32 0.0, %v315
        %v317 = vpop.f32.mrf.mxu0
        %318 = vmatprep.mubr.bf16.mxu0 0
        %319 = vmatmul.mubr.bf16.gmra.mxu0 %v266
        %v320 = vpop.f32.mrf.mxu0
        %v321 = vadd.f32 0.0, %v320
        %v322 = vpop.f32.mrf.mxu0
        %v323 = vpop.f32.mrf.mxu0
        %v324 = vadd.f32 0.0, %v323
        %v325 = vpop.f32.mrf.mxu0
        %326 = vmatprep.mubr.bf16.mxu0 0
        %327 = vmatmul.mubr.bf16.gmra.mxu0 %v269
        %v328 = vpop.f32.mrf.mxu0
        %v329 = vadd.f32 0.0, %v328
        %v330 = vpop.f32.mrf.mxu0
        %v331 = vpop.f32.mrf.mxu0
        %v332 = vadd.f32 0.0, %v331
        %v333 = vpop.f32.mrf.mxu0
        %334 = vmatprep.mubr.bf16.mxu0 0
        %335 = vmatmul.mubr.bf16.gmra.mxu0 %v272
        %v336 = vpop.f32.mrf.mxu0
        %v337 = vadd.f32 0.0, %v336
        %v338 = vpop.f32.mrf.mxu0
        %v339 = vpop.f32.mrf.mxu0
        %v340 = vadd.f32 0.0, %v339
        %v341 = vpop.f32.mrf.mxu0
        %342 = vdwg.mxu0
        %vm343 = vcmask 64512
        %v344 = vsel %vm343, %v313, 0.0
        %v345 = vsel %vm343, %v316, 0.0
        %v346 = vadd.f32 %v344, %v345
        %v347 = vsel %vm343, %v321, 0.0
        %v348 = vadd.f32 %v346, %v347
        %v349 = vsel %vm343, %v324, 0.0
        %v350 = vadd.f32 %v348, %v349
        %v351 = vsel %vm343, %v329, 0.0
        %v352 = vadd.f32 %v350, %v351
        %v353 = vsel %vm343, %v332, 0.0
        %v354 = vadd.f32 %v352, %v353
        %v355 = vsel %vm343, %v337, 0.0
        %v356 = vadd.f32 %v354, %v355
        %v357 = vsel %vm343, %v340, 0.0
        %v358 = vadd.f32 %v356, %v357
        %v359 = vrot.slane %v358, 4
        %v360 = vadd.f32 %v358, %v359
        %v361 = vrot.slane %v360, 2
        %v362 = vadd.f32 %v360, %v361
        %v363 = vrot.slane %v362, 1
        %v364 = vadd.f32 %v362, %v363
        %vm365 = vcmask 57344
        %366 = vst.msk [vmem:[%s201] sm:$0x1] %vm365, %v364
        %v367 = vmul.f32 %v313, %v313
        %v368 = vmul.f32 %v316, %v316
        %v369 = vmul.f32 %v321, %v321
        %v370 = vmul.f32 %v324, %v324
        %v371 = vmul.f32 %v329, %v329
        %v372 = vmul.f32 %v332, %v332
        %v373 = vmul.f32 %v337, %v337
        %v374 = vmul.f32 %v340, %v340
        %v375 = vsel %vm343, %v367, 0.0
        %v376 = vsel %vm343, %v368, 0.0
        %v377 = vadd.f32 %v375, %v376
        %v378 = vsel %vm343, %v369, 0.0
        %v379 = vadd.f32 %v377, %v378
        %v380 = vsel %vm343, %v370, 0.0
        %v381 = vadd.f32 %v379, %v380
        %v382 = vsel %vm343, %v371, 0.0
        %v383 = vadd.f32 %v381, %v382
        %v384 = vsel %vm343, %v372, 0.0
        %v385 = vadd.f32 %v383, %v384
        %v386 = vsel %vm343, %v373, 0.0
        %v387 = vadd.f32 %v385, %v386
        %v388 = vsel %vm343, %v374, 0.0
        %v389 = vadd.f32 %v387, %v388
        %v390 = vrot.slane %v389, 4
        %v391 = vadd.f32 %v389, %v390
        %v392 = vrot.slane %v391, 2
        %v393 = vadd.f32 %v391, %v392
        %v394 = vrot.slane %v393, 1
        %v395 = vadd.f32 %v393, %v394
        %396 = vst.msk [vmem:[%s201 + $0x1] sm:$0x1] %vm365, %v395
        %397 = vxpose.xlu0.b32.start [1/16] %v313, 128
        %398 = vxpose.xlu0.b32.cont [2/16] %v316, 128
        %399 = vxpose.xlu0.b32.cont [3/16] %v321, 128
        %400 = vxpose.xlu0.b32.cont [4/16] %v324, 128
        %401 = vxpose.xlu0.b32.cont [5/16] %v329, 128
        %402 = vxpose.xlu0.b32.cont [6/16] %v332, 128
        %403 = vxpose.xlu0.b32.cont [7/16] %v337, 128
        %404 = vxpose.xlu0.b32.cont [8/16] %v340, 128
        %405 = vxpose.xlu0.b32.cont [9/16] 0.0, 128
        %406 = vxpose.xlu0.b32.cont [10/16] 0.0, 128
        %407 = vxpose.xlu0.b32.cont [11/16] 0.0, 128
        %408 = vxpose.xlu0.b32.cont [12/16] 0.0, 128
        %409 = vxpose.xlu0.b32.cont [13/16] 0.0, 128
        %410 = vxpose.xlu0.b32.cont [14/16] 0.0, 128
        %411 = vxpose.xlu0.b32.cont [15/16] 0.0, 128
        %412 = vxpose.xlu0.b32.end [16/16] 0.0, 128
        %v413 = vpop.trf.xlu0
        %v414 = vpop.trf.xlu0
        %v415 = vpop.trf.xlu0
        %v416 = vpop.trf.xlu0
        %v417 = vpop.trf.xlu0
        %v418 = vpop.trf.xlu0
        %v419 = vpop.trf.xlu0
        %v420 = vpop.trf.xlu0
        %v421 = vpop.trf.xlu0
        %v422 = vpop.trf.xlu0
        %v423 = vpop.trf.xlu0
        %v424 = vpop.trf.xlu0
        %v425 = vpop.trf.xlu0
        %v426 = vpop.trf.xlu0
        %v427 = vpop.trf.xlu0
        %v428 = vpop.trf.xlu0
        %v429 = vpack.c.bf16 %v413, %v413
        %vm430 = vcmask 519168
        %431 = vst.msk [vmem:[%s194] sm:$0xf] %vm430, %v429
        %s432 = sand.u32 %s92, 1
        %s433 = scalar_lea.sflag [#allocation3], %s432
        %s434 = sand.u32 %s92, 1
        %s435 = smul.addr %s434, 4
        %s436 = scalar_lea.vmem [#allocation2], %s435
        %s437 = sand.u32 %s120, 1
        %s438 = scalar_lea.sflag [#allocation5], %s437
        %s439 = sand.u32 %s120, 1
        %s440 = smul.addr %s439, 2
        %s441 = scalar_lea.vmem [#allocation4], %s440
        // Predicated region
        $region29: #{tpu_custom_call.1} parent=27 // pred_check
          %p442 = pneg %p102
        $region30: #{tpu_custom_call.1} parent=27 // pred_check_branch
          %444 = sbr.rel (%p442) target = $region32
        $region31: #{tpu_custom_call.1} parent=27 // pred_region
          %s446 = ssub.s32 64, 64
          %447 = vsyncadd %s433, %s446
          %s448 = sadd.s32 %s26, %s25
          %s449 = smul.addr %s448, 64
          %s450 = scalar_lea.hbm %s2, %s449
          %s452 = sshll.u32 %s436, 4
          %s453 = int_to_ptr.vmem [resolvable:$true] %s452
          %455 = dma.vmem_to_hbm [thread:$0]  %s453, 64, %s450, %s433
        $region32: #{tpu_custom_call.1} parent=27 // pred_fallthru
          _
        // Predicated region
        $region33: #{tpu_custom_call.1} parent=27 // pred_check
          %p456 = pneg %p130
        $region34: #{tpu_custom_call.1} parent=27 // pred_check_branch
          %458 = sbr.rel (%p456) target = $region36
        $region35: #{tpu_custom_call.1} parent=27 // pred_region
          %s460 = ssub.s32 32, 32
          %461 = vsyncadd %s438, %s460
          %s462 = sadd.s32 %s26, %s25
          %s463 = smul.addr %s462, 32
          %s464 = scalar_lea.hbm %s3, %s463
          %s466 = sshll.u32 %s441, 4
          %s467 = int_to_ptr.vmem [resolvable:$true] %s466
          %469 = dma.vmem_to_hbm [thread:$0]  %s467, 32, %s464, %s438
        $region36: #{tpu_custom_call.1} parent=27 // pred_fallthru
          _
      $region28: #{tpu_custom_call.1} parent=5 // pred_fallthru
        _
      %p470 = scmp.le.s32.totalorder 2, %s16
      // Predicated region
      $region37: #{tpu_custom_call.1} parent=5 // pred_check
        %p471 = pneg %p470
      $region38: #{tpu_custom_call.1} parent=5 // pred_check_branch
        %473 = sbr.rel (%p471) target = $region40
      $region39: #{tpu_custom_call.1} parent=5 // pred_region
        %s474 = ssub.s32 %s16, 2
        // Predicated region
        $region41: #{tpu_custom_call.1} parent=39 // pred_check
          %p475 = pneg %p108
        $region42: #{tpu_custom_call.1} parent=39 // pred_check_branch
          %477 = sbr.rel (%p475) target = $region44
        $region43: #{tpu_custom_call.1} parent=39 // pred_region
          %s478 = sand.u32 %s93, 1
          %s479 = scalar_lea.sflag [#allocation3], %s478
          %s480 = sand.u32 %s93, 1
          %s481 = smul.addr %s480, 4
          %s482 = scalar_lea.vmem [#allocation2], %s481
          %483 = dma.done %s479, 64
        $region44: #{tpu_custom_call.1} parent=39 // pred_fallthru
          _
        // Predicated region
        $region45: #{tpu_custom_call.1} parent=39 // pred_check
          %p484 = pneg %p136
        $region46: #{tpu_custom_call.1} parent=39 // pred_check_branch
          %486 = sbr.rel (%p484) target = $region48
        $region47: #{tpu_custom_call.1} parent=39 // pred_region
          %s487 = sand.u32 %s121, 1
          %s488 = scalar_lea.sflag [#allocation5], %s487
          %s489 = sand.u32 %s121, 1
          %s490 = smul.addr %s489, 2
          %s491 = scalar_lea.vmem [#allocation4], %s490
          %492 = dma.done %s488, 32
        $region48: #{tpu_custom_call.1} parent=39 // pred_fallthru
          _
      $region40: #{tpu_custom_call.1} parent=5 // pred_fallthru
        _
    $region6: #{tpu_custom_call.1} parent=1 // loop_footer
      %s20 = sadd.s32 1, %s16
    $region7: #{tpu_custom_call.1} parent=1 // loop_footer_branch
      %15 = sbr.rel target = $region3
    $region8: #{tpu_custom_call.1} parent=1 // loop_exit
      _
    %493 = vsyncpa [#allocation3], 1
    %s494 = scalar_lea.sflag [#allocation3], 1
    %495 = vsyncpa %s494, 1
    %496 = vsyncpa [#allocation5], 1
    %s497 = scalar_lea.sflag [#allocation5], 1
    %498 = vsyncpa %s497, 1

</llo_original>
